<compile_context>
chip_gen: v7x
topology: tpu7x:2x2x1
jax: 0.10.0
libtpu: 0.0.40
codegen_flags: <defaults>
</compile_context>

<pallas_src>
import functools

import jax
import jax.numpy as jnp
from jax.experimental import pallas as pl
from jax.experimental.pallas import tpu as pltpu


def _round_up(n, m):
    return ((n + m - 1) // m) * m


def _gelu_tanh(x):
    # GELU with tanh approximation, matching torch.nn.GELU(approximate='tanh').
    c = jnp.sqrt(2.0 / jnp.pi).astype(x.dtype)
    return 0.5 * x * (1.0 + jnp.tanh(c * (x + 0.044715 * (x * x * x))))


def mlp_kernel(x_ref, w1_ref, w2_ref, o_ref):
    # x_ref : (tm, D_in)    token tile (compute dtype, e.g. bf16)
    # w1_ref: (D_in, H)     fc1 weight, pre-transposed, resident in VMEM
    # w2_ref: (H, D_out)    fc2 weight, pre-transposed, resident in VMEM
    x = x_ref[...]
    # fc1: (tm, H) with f32 accumulation on the MXU.
    h = jnp.dot(x, w1_ref[...], preferred_element_type=jnp.float32)
    # GELU (tanh approx) in f32 (VPU + EUP tanh).
    g = _gelu_tanh(h)
    # fc2: cast activation back to weight dtype (intentional mixed precision),
    # accumulate in f32 on the MXU.
    o = jnp.dot(g.astype(w2_ref.dtype), w2_ref[...],
                preferred_element_type=jnp.float32)
    o_ref[...] = o.astype(o_ref.dtype)


@functools.partial(jax.jit, static_argnames=("tm", "compute_dtype"))
def mlp_forward(x, w1, w2, *, tm=256, compute_dtype=jnp.bfloat16):
    """x: [B, T, D_in]; w1: [H, D_in]; w2: [D_out, H] -> [B, T, D_out].

    w1/w2 use the torch nn.Linear layout ([out, in]); they are transposed
    once here (outside the kernel) so the kernel body is pure MXU work.
    """
    B, T, D_in = x.shape
    H, _ = w1.shape
    D_out, _ = w2.shape
    M = B * T
    out_dtype = x.dtype

    # ---- pad to hardware-friendly shapes (zero padding is exact here). ----
    D_in_p = _round_up(D_in, 128)
    H_p = _round_up(H, 128)
    D_out_p = _round_up(D_out, 128)            # lane-dense output stores
    tm_eff = min(tm, _round_up(M, 8))          # don't over-pad tiny demos
    M_p = _round_up(M, tm_eff)                 # ragged M handled by padding

    x2d = x.reshape(M, D_in).astype(compute_dtype)
    x2d = jnp.pad(x2d, ((0, M_p - M), (0, D_in_p - D_in)))

    # Pre-transpose once: [D_in, H] and [H, D_out].
    w1t = jnp.pad(w1.T.astype(compute_dtype),
                  ((0, D_in_p - D_in), (0, H_p - H)))
    w2t = jnp.pad(w2.T.astype(compute_dtype),
                  ((0, H_p - H), (0, D_out_p - D_out)))

    # ---- explicit VMEM budget (resident weights + streamed token tiles). --
    cbytes = jnp.dtype(compute_dtype).itemsize
    obytes = jnp.dtype(out_dtype).itemsize
    vmem_bytes = (
        (D_in_p * H_p + H_p * D_out_p) * cbytes   # resident weights
        + 2 * tm_eff * D_in_p * cbytes            # double-buffered x tile
        + 2 * tm_eff * D_out_p * obytes           # double-buffered out tile
        + 2 * tm_eff * H_p * 4                    # f32 h / gelu intermediate
    )
    vmem_limit = int(min(max(int(vmem_bytes * 1.5) + (4 << 20), 32 << 20),
                         100 << 20))
    # TODO(synk): for very large H on v7x (64 MiB VMEM), add a hidden-dim grid
    # axis (stream W1/W2 blocks, accumulate fc2 in f32 scratch with pl.when)
    # instead of keeping both weights fully resident.

    grid = (M_p // tm_eff,)
    out2d = pl.pallas_call(
        mlp_kernel,
        out_shape=jax.ShapeDtypeStruct((M_p, D_out_p), out_dtype),
        grid_spec=pltpu.PrefetchScalarGridSpec(
            num_scalar_prefetch=0,
            grid=grid,
            in_specs=[
                pl.BlockSpec((tm_eff, D_in_p), lambda i: (i, 0)),  # token tile
                pl.BlockSpec((D_in_p, H_p), lambda i: (0, 0)),     # fc1 (resident)
                pl.BlockSpec((H_p, D_out_p), lambda i: (0, 0)),    # fc2 (resident)
            ],
            out_specs=pl.BlockSpec((tm_eff, D_out_p), lambda i: (i, 0)),
        ),
        compiler_params=pltpu.CompilerParams(
            dimension_semantics=("parallel",),
            vmem_limit_bytes=vmem_limit,
        ),
    )(x2d, w1t, w2t)

    return out2d[:M, :D_out].reshape(B, T, D_out)


def mlp_reference(x, w1, w2, compute_dtype=jnp.bfloat16):
    # Pure-JAX reference with the same mixed-precision policy as the kernel.
    xc = x.astype(compute_dtype)
    h = jnp.einsum("btd,hd->bth", xc, w1.astype(compute_dtype),
                   preferred_element_type=jnp.float32)
    g = _gelu_tanh(h)
    o = jnp.einsum("bth,oh->bto", g.astype(compute_dtype),
                   w2.astype(compute_dtype),
                   preferred_element_type=jnp.float32)
    return o.astype(x.dtype)


if __name__ == "__main__":
    # Small shapes consistent with the module: in=32, hidden=64, out=32.
    B, T = 2, 8
    in_features, hidden_features, out_features = 32, 64, 32

    key = jax.random.PRNGKey(0)
    kx, k1, k2 = jax.random.split(key, 3)

    x = jax.random.normal(kx, (B, T, in_features), dtype=jnp.float32)
    # Deterministic parameter init (Linear weight layout is [out, in]).
    w1 = jax.random.normal(k1, (hidden_features, in_features),
                           dtype=jnp.float32) * 0.02
    w2 = jax.random.normal(k2, (out_features, hidden_features),
                           dtype=jnp.float32) * 0.02

    out = mlp_forward(x, w1, w2)
    out = jax.block_until_ready(out)

    ref = mlp_reference(x, w1, w2)
    assert out.shape == (B, T, out_features)
    assert jnp.allclose(out, ref, atol=5e-3, rtol=5e-3), float(
        jnp.max(jnp.abs(out - ref)))

    print("KERNEL_OK")
</pallas_src>

<mosaic_0001>
module attributes {stable_mosaic.version = 11 : i64} {
  func.func @mlp_kernel(%arg0: i32, %arg1: memref<16x128xbf16, #tpu.memory_space<vmem>>, %arg2: memref<128x128xbf16, #tpu.memory_space<vmem>>, %arg3: memref<128x128xbf16, #tpu.memory_space<vmem>>, %arg4: memref<16x128xf32, #tpu.memory_space<vmem>>) attributes {dimension_semantics = [#tpu.dimension_semantics<parallel>], iteration_bounds = array<i64: 1>, scalar_prefetch = 0 : i64, scratch_operands = 0 : i64, tpu.core_type = #tpu.core_type<tc>, window_params = [{transform_indices = @transform_0, window_bounds = array<i64: 16, 128>}, {pipeline_mode = #tpu.pipeline_mode<synchronous>, transform_indices = @transform_1, window_bounds = array<i64: 128, 128>}, {pipeline_mode = #tpu.pipeline_mode<synchronous>, transform_indices = @transform_2, window_bounds = array<i64: 128, 128>}, {transform_indices = @transform_3, window_bounds = array<i64: 16, 128>}]} {
    %c0 = arith.constant 0 : index
    %c0_0 = arith.constant 0 : index
    %0 = vector.load %arg1[%c0, %c0_0] : memref<16x128xbf16, #tpu.memory_space<vmem>>, vector<16x128xbf16>
    %c0_1 = arith.constant 0 : index
    %c0_2 = arith.constant 0 : index
    %1 = vector.load %arg2[%c0_1, %c0_2] : memref<128x128xbf16, #tpu.memory_space<vmem>>, vector<128x128xbf16>
    %cst = arith.constant dense<0.000000e+00> : vector<16x128xf32>
    %2 = tpu.matmul %0, %1, %cst {dimension_numbers = #tpu.dot_dimension_numbers<[1], [0], [0], [1], [0, 0, 1, 1], [], []>} : vector<16x128xbf16>, vector<128x128xbf16>, vector<16x128xf32> -> vector<16x128xf32>
    %cst_3 = arith.constant 0.636619746 : f32
    %3 = math.sqrt %cst_3 : f32
    %cst_4 = arith.constant 5.000000e-01 : f32
    %4 = vector.broadcast %cst_4 : f32 to vector<16x128xf32>
    %5 = arith.mulf %4, %2 : vector<16x128xf32>
    %6 = arith.mulf %2, %2 : vector<16x128xf32>
    %7 = arith.mulf %6, %2 : vector<16x128xf32>
    %cst_5 = arith.constant 4.471500e-02 : f32
    %8 = vector.broadcast %cst_5 : f32 to vector<16x128xf32>
    %9 = arith.mulf %8, %7 : vector<16x128xf32>
    %10 = arith.addf %2, %9 : vector<16x128xf32>
    %11 = vector.broadcast %3 : f32 to vector<16x128xf32>
    %12 = arith.mulf %11, %10 : vector<16x128xf32>
    %13 = math.tanh %12 : vector<16x128xf32>
    %cst_6 = arith.constant 1.000000e+00 : f32
    %14 = vector.broadcast %cst_6 : f32 to vector<16x128xf32>
    %15 = arith.addf %14, %13 : vector<16x128xf32>
    %16 = arith.mulf %5, %15 : vector<16x128xf32>
    %17 = arith.truncf %16 : vector<16x128xf32> to vector<16x128xbf16>
    %c0_7 = arith.constant 0 : index
    %c0_8 = arith.constant 0 : index
    %18 = vector.load %arg3[%c0_7, %c0_8] : memref<128x128xbf16, #tpu.memory_space<vmem>>, vector<128x128xbf16>
    %cst_9 = arith.constant dense<0.000000e+00> : vector<16x128xf32>
    %19 = tpu.matmul %17, %18, %cst_9 {dimension_numbers = #tpu.dot_dimension_numbers<[1], [0], [0], [1], [0, 0, 1, 1], [], []>} : vector<16x128xbf16>, vector<128x128xbf16>, vector<16x128xf32> -> vector<16x128xf32>
    %c0_10 = arith.constant 0 : index
    %c0_11 = arith.constant 0 : index
    %20 = vector.load %arg4[%c0_10, %c0_11] : memref<16x128xf32, #tpu.memory_space<vmem>>, vector<16x128xf32>
    tpu.vector_store %arg4[%c0_10, %c0_11], %19 {strides = array<i32>} : memref<16x128xf32, #tpu.memory_space<vmem>>, vector<16x128xf32>,
    return
  }
  func.func @transform_0(%arg0: i32) -> (i32, i32) {
    %c0_i32 = arith.constant 0 : i32
    %c0_i32_0 = arith.constant 0 : i32
    return %arg0, %c0_i32 : i32, i32
  }
  func.func @transform_1(%arg0: i32) -> (i32, i32) {
    %c0_i32 = arith.constant 0 : i32
    %c0_i32_0 = arith.constant 0 : i32
    %c0_i32_1 = arith.constant 0 : i32
    return %c0_i32, %c0_i32_0 : i32, i32
  }
  func.func @transform_2(%arg0: i32) -> (i32, i32) {
    %c0_i32 = arith.constant 0 : i32
    %c0_i32_0 = arith.constant 0 : i32
    %c0_i32_1 = arith.constant 0 : i32
    return %c0_i32, %c0_i32_0 : i32, i32
  }
  func.func @transform_3(%arg0: i32) -> (i32, i32) {
    %c0_i32 = arith.constant 0 : i32
    %c0_i32_0 = arith.constant 0 : i32
    return %arg0, %c0_i32 : i32, i32
  }
}

</mosaic_0001>

<llo_original>
// kernel: mlp_forward.1
$region0: #{mlp_forward.1}
  #allocation0 [shape = 'u32[]', space=smem, size = 0x4, offset = 0x4, fixed_abs, tag = 'smem constant byte address 0x4 - core index']
  #allocation1 [shape = 'u32[144,128]{1,0:T(1,128)}', space=vmem, size = 0x12000, scoped, tag = 'internal scratch']
  %s0 = inlined_call_operand.vmem [shape: bf16[16,128], index: 0, kind: input, shape index: {}]
  %s1 = inlined_call_operand.vmem [shape: bf16[128,128], index: 1, kind: input, shape index: {}]
  %s2 = inlined_call_operand.vmem [shape: bf16[128,128], index: 2, kind: input, shape index: {}]
  %s3 = inlined_call_operand.vmem [shape: f32[16,128], index: 3, kind: output, shape index: {}]
  %s4 = sld [smem:[#allocation0]]
  $region22: #{mlp_forward.1} parent=0
    _
  %s6 = ssub.s32 1, %s4
  %s7 = scalar_select 0, %s6, %s4
  // Predicated region
  $region2: #{mlp_forward.1} parent=0 // pred_check
    _
  $region3: #{mlp_forward.1} parent=0 // pred_check_branch
    %9 = sbr.rel (0) target = $region5
  $region4: #{mlp_forward.1} parent=0 // pred_region
    _
  $region5: #{mlp_forward.1} parent=0 // pred_fallthru
    _
  // Predicated region
  $region6: #{mlp_forward.1} parent=0 // pred_check
    _
  $region7: #{mlp_forward.1} parent=0 // pred_check_branch
    %11 = sbr.rel (0) target = $region9
  $region8: #{mlp_forward.1} parent=0 // pred_region
    _
  $region9: #{mlp_forward.1} parent=0 // pred_fallthru
    _
  // Predicated region
  $region10: #{mlp_forward.1} parent=0 // pred_check
    _
  $region11: #{mlp_forward.1} parent=0 // pred_check_branch
    %13 = sbr.rel (0) target = $region13
  $region12: #{mlp_forward.1} parent=0 // pred_region
    _
  $region13: #{mlp_forward.1} parent=0 // pred_fallthru
    _
  %v15 = vld [vmem:[%s0] sm:$0xf]
  %v16 = vld [vmem:[%s0 + $0x4] sm:$0xf]
  %v17 = vld [vmem:[%s1] sm:$0xf]
  %v18 = vld [vmem:[%s1 + $0x4] sm:$0xf]
  %v19 = vld [vmem:[%s1 + $0x8] sm:$0xf]
  %v20 = vld [vmem:[%s1 + $0xc] sm:$0xf]
  %v21 = vld [vmem:[%s1 + $0x10] sm:$0xf]
  %v22 = vld [vmem:[%s1 + $0x14] sm:$0xf]
  %v23 = vld [vmem:[%s1 + $0x18] sm:$0xf]
  %v24 = vld [vmem:[%s1 + $0x1c] sm:$0xf]
  %v25 = vld [vmem:[%s1 + $0x20] sm:$0xf]
  %v26 = vld [vmem:[%s1 + $0x24] sm:$0xf]
  %v27 = vld [vmem:[%s1 + $0x28] sm:$0xf]
  %v28 = vld [vmem:[%s1 + $0x2c] sm:$0xf]
  %v29 = vld [vmem:[%s1 + $0x30] sm:$0xf]
  %v30 = vld [vmem:[%s1 + $0x34] sm:$0xf]
  %v31 = vld [vmem:[%s1 + $0x38] sm:$0xf]
  %v32 = vld [vmem:[%s1 + $0x3c] sm:$0xf]
  %v35 = vunpack.c.l.b16 %v15
  %v36 = vunpack.c.l.b16 %v16
  %v37 = vpack.c.b16 %v36, %v35
  %v55 = vunpack.c.l.b16 %v17
  %v56 = vunpack.c.l.b16 %v18
  %v57 = vunpack.c.l.b16 %v19
  %v58 = vunpack.c.l.b16 %v20
  %v59 = vunpack.c.l.b16 %v21
  %v60 = vunpack.c.l.b16 %v22
  %v61 = vunpack.c.l.b16 %v23
  %v62 = vunpack.c.l.b16 %v24
  %v63 = vunpack.c.l.b16 %v25
  %v64 = vunpack.c.l.b16 %v26
  %v65 = vunpack.c.l.b16 %v27
  %v66 = vunpack.c.l.b16 %v28
  %v67 = vunpack.c.l.b16 %v29
  %v68 = vunpack.c.l.b16 %v30
  %v69 = vunpack.c.l.b16 %v31
  %v70 = vunpack.c.l.b16 %v32
  %v71 = vpack.c.b16 %v56, %v55
  %v72 = vpack.c.b16 %v58, %v57
  %v73 = vpack.c.b16 %v60, %v59
  %v74 = vpack.c.b16 %v62, %v61
  %v75 = vpack.c.b16 %v64, %v63
  %v76 = vpack.c.b16 %v66, %v65
  %v77 = vpack.c.b16 %v68, %v67
  %v78 = vpack.c.b16 %v70, %v69
  %87 = vmatprep.subr.bf16.mxu0 0
  %88 = vmatpush1.bf16.msra.mxu0 %v71
  %89 = vmatprep.subr.bf16.mxu0 0
  %90 = vmatpush1.bf16.msra.mxu0 %v72
  %91 = vmatprep.subr.bf16.mxu0 0
  %92 = vmatpush1.bf16.msra.mxu0 %v73
  %93 = vmatprep.subr.bf16.mxu0 0
  %94 = vmatpush1.bf16.msra.mxu0 %v74
  %95 = vmatprep.subr.bf16.mxu0 0
  %96 = vmatpush1.bf16.msra.mxu0 %v75
  %97 = vmatprep.subr.bf16.mxu0 0
  %98 = vmatpush1.bf16.msra.mxu0 %v76
  %99 = vmatprep.subr.bf16.mxu0 0
  %100 = vmatpush1.bf16.msra.mxu0 %v77
  %101 = vmatprep.subr.bf16.mxu0 0
  %102 = vmatpush1.bf16.msra.mxu0 %v78
  %103 = vmatprep.subr.bf16.mxu0 0
  %104 = vmatpush1.bf16.msra.mxu0 0
  %105 = vmatprep.subr.bf16.mxu0 0
  %106 = vmatpush1.bf16.msra.mxu0 0
  %107 = vmatprep.subr.bf16.mxu0 0
  %108 = vmatpush1.bf16.msra.mxu0 0
  %109 = vmatprep.subr.bf16.mxu0 0
  %110 = vmatpush1.bf16.msra.mxu0 0
  %111 = vmatprep.subr.bf16.mxu0 0
  %112 = vmatpush1.bf16.msra.mxu0 0
  %113 = vmatprep.subr.bf16.mxu0 0
  %114 = vmatpush1.bf16.msra.mxu0 0
  %115 = vmatprep.subr.bf16.mxu0 0
  %116 = vmatpush1.bf16.msra.mxu0 0
  %117 = vmatprep.subr.bf16.mxu0 0
  %118 = vmatpush1.bf16.msra.mxu0 0
  %119 = vmatprep.mubr.bf16.mxu0 0
  %120 = vmatmul.mubr.bf16.gmra.mrb[0].mxu0 %v37
  %v121 = vpop.f32.mrb[0].mxu0
  %v122 = vadd.f32 0.0, %v121
  %v123 = vpop.f32.mrb[0].mxu0
  %v124 = vpop.f32.mrb[0].mxu0
  %v125 = vadd.f32 0.0, %v124
  %v126 = vpop.f32.mrb[0].mxu0
  %127 = vdwg.mxu0
  %v128 = vmul.f32 %v122, 0.5
  %v129 = vmul.f32 %v125, 0.5
  %v130 = vmul.f32 %v122, %v122
  %v131 = vmul.f32 %v125, %v125
  %v132 = vmul.f32 %v130, %v122
  %v133 = vmul.f32 %v131, %v125
  %v134 = vmul.f32 %v132, 0.044715
  %v135 = vmul.f32 %v133, 0.044715
  %v136 = vadd.f32 %v122, %v134
  %v137 = vadd.f32 %v125, %v135
  %v138 = vmul.f32 %v136, 0.7978845
  %v139 = vmul.f32 %v137, 0.7978845
  %v140 = vtanh.pop %v138
  %v141 = vtanh.pop %v139
  %v142 = vadd.f32 %v140, 1.0
  %v143 = vadd.f32 %v141, 1.0
  %v144 = vmul.f32 %v128, %v142
  %v145 = vmul.f32 %v129, %v143
  %v146 = vpack.c.bf16 %v145, %v144
  %v147 = vld [vmem:[%s2] sm:$0xf]
  %v148 = vld [vmem:[%s2 + $0x4] sm:$0xf]
  %v149 = vld [vmem:[%s2 + $0x8] sm:$0xf]
  %v150 = vld [vmem:[%s2 + $0xc] sm:$0xf]
  %v151 = vld [vmem:[%s2 + $0x10] sm:$0xf]
  %v152 = vld [vmem:[%s2 + $0x14] sm:$0xf]
  %v153 = vld [vmem:[%s2 + $0x18] sm:$0xf]
  %v154 = vld [vmem:[%s2 + $0x1c] sm:$0xf]
  %v155 = vld [vmem:[%s2 + $0x20] sm:$0xf]
  %v156 = vld [vmem:[%s2 + $0x24] sm:$0xf]
  %v157 = vld [vmem:[%s2 + $0x28] sm:$0xf]
  %v158 = vld [vmem:[%s2 + $0x2c] sm:$0xf]
  %v159 = vld [vmem:[%s2 + $0x30] sm:$0xf]
  %v160 = vld [vmem:[%s2 + $0x34] sm:$0xf]
  %v161 = vld [vmem:[%s2 + $0x38] sm:$0xf]
  %v162 = vld [vmem:[%s2 + $0x3c] sm:$0xf]
  %v179 = vunpack.c.l.b16 %v147
  %v180 = vunpack.c.l.b16 %v148
  %v181 = vunpack.c.l.b16 %v149
  %v182 = vunpack.c.l.b16 %v150
  %v183 = vunpack.c.l.b16 %v151
  %v184 = vunpack.c.l.b16 %v152
  %v185 = vunpack.c.l.b16 %v153
  %v186 = vunpack.c.l.b16 %v154
  %v187 = vunpack.c.l.b16 %v155
  %v188 = vunpack.c.l.b16 %v156
  %v189 = vunpack.c.l.b16 %v157
  %v190 = vunpack.c.l.b16 %v158
  %v191 = vunpack.c.l.b16 %v159
  %v192 = vunpack.c.l.b16 %v160
  %v193 = vunpack.c.l.b16 %v161
  %v194 = vunpack.c.l.b16 %v162
  %v195 = vpack.c.b16 %v180, %v179
  %v196 = vpack.c.b16 %v182, %v181
  %v197 = vpack.c.b16 %v184, %v183
  %v198 = vpack.c.b16 %v186, %v185
  %v199 = vpack.c.b16 %v188, %v187
  %v200 = vpack.c.b16 %v190, %v189
  %v201 = vpack.c.b16 %v192, %v191
  %v202 = vpack.c.b16 %v194, %v193
  %211 = vmatprep.subr.bf16.mxu0 0
  %212 = vmatpush1.bf16.msra.mxu0 %v195
  %213 = vmatprep.subr.bf16.mxu0 0
  %214 = vmatpush1.bf16.msra.mxu0 %v196
  %215 = vmatprep.subr.bf16.mxu0 0
  %216 = vmatpush1.bf16.msra.mxu0 %v197
  %217 = vmatprep.subr.bf16.mxu0 0
  %218 = vmatpush1.bf16.msra.mxu0 %v198
  %219 = vmatprep.subr.bf16.mxu0 0
  %220 = vmatpush1.bf16.msra.mxu0 %v199
  %221 = vmatprep.subr.bf16.mxu0 0
  %222 = vmatpush1.bf16.msra.mxu0 %v200
  %223 = vmatprep.subr.bf16.mxu0 0
  %224 = vmatpush1.bf16.msra.mxu0 %v201
  %225 = vmatprep.subr.bf16.mxu0 0
  %226 = vmatpush1.bf16.msra.mxu0 %v202
  %227 = vmatprep.subr.bf16.mxu0 0
  %228 = vmatpush1.bf16.msra.mxu0 0
  %229 = vmatprep.subr.bf16.mxu0 0
  %230 = vmatpush1.bf16.msra.mxu0 0
  %231 = vmatprep.subr.bf16.mxu0 0
  %232 = vmatpush1.bf16.msra.mxu0 0
  %233 = vmatprep.subr.bf16.mxu0 0
  %234 = vmatpush1.bf16.msra.mxu0 0
  %235 = vmatprep.subr.bf16.mxu0 0
  %236 = vmatpush1.bf16.msra.mxu0 0
  %237 = vmatprep.subr.bf16.mxu0 0
  %238 = vmatpush1.bf16.msra.mxu0 0
  %239 = vmatprep.subr.bf16.mxu0 0
  %240 = vmatpush1.bf16.msra.mxu0 0
  %241 = vmatprep.subr.bf16.mxu0 0
  %242 = vmatpush1.bf16.msra.mxu0 0
  %243 = vmatprep.mubr.bf16.mxu0 0
  %244 = vmatmul.mubr.bf16.gmra.mrb[0].mxu0 %v146
  %v245 = vpop.f32.mrb[0].mxu0
  %v246 = vadd.f32 0.0, %v245
  %v247 = vpop.f32.mrb[0].mxu0
  %v248 = vpop.f32.mrb[0].mxu0
  %v249 = vadd.f32 0.0, %v248
  %v250 = vpop.f32.mrb[0].mxu0
  %251 = vdwg.mxu0
  %252 = vst [vmem:[%s3] sm:$0xff] %v246
  %253 = vst [vmem:[%s3 + $0x8] sm:$0xff] %v249
  // Predicated region
  $region14: #{mlp_forward.1} parent=0 // pred_check
    _
  $region15: #{mlp_forward.1} parent=0 // pred_check_branch
    %255 = sbr.rel (0) target = $region17
  $region16: #{mlp_forward.1} parent=0 // pred_region
    _
  $region17: #{mlp_forward.1} parent=0 // pred_fallthru
    _
  // Predicated region
  $region18: #{mlp_forward.1} parent=0 // pred_check
    _
  $region19: #{mlp_forward.1} parent=0 // pred_check_branch
    %257 = sbr.rel (0) target = $region21
  $region20: #{mlp_forward.1} parent=0 // pred_region
    _
  $region21: #{mlp_forward.1} parent=0 // pred_fallthru
    _

</llo_original>
